<compile_context>
chip_gen: v7x
topology: tpu7x:2x2x1
jax: 0.10.0
libtpu: 0.0.40
codegen_flags: <defaults>
</compile_context>

<pallas_src>
import functools

import jax
import jax.numpy as jnp
from jax import lax
from jax.experimental import pallas as pl
from jax.experimental.pallas import tpu as pltpu


# --------------------------- tiled matmul kernel ----------------------------

def _matmul_kernel(x_ref, w_ref, o_ref, acc_ref):
    @pl.when(pl.program_id(2) == 0)
    def _():
        acc_ref[...] = jnp.zeros_like(acc_ref)

    acc_ref[...] += jnp.dot(x_ref[...], w_ref[...],
                            preferred_element_type=jnp.float32)

    @pl.when(pl.program_id(2) == pl.num_programs(2) - 1)
    def _():
        o_ref[...] = acc_ref[...].astype(o_ref.dtype)


def _fit_tile(dim, target):
    # use the target tile when it divides the dim, otherwise fall back to the
    # full dim (always a legal block shape).
    return target if dim % target == 0 else dim


def _linear(x, w_t, tm=256, tn=256, tk=512):
    """x:(M,K) @ w_t:(K,N) -> (M,N), tiled + double-buffered MXU matmul."""
    M, K = x.shape
    K2, N = w_t.shape
    assert K == K2
    tm, tn, tk = _fit_tile(M, tm), _fit_tile(N, tn), _fit_tile(K, tk)
    return pl.pallas_call(
        _matmul_kernel,
        out_shape=jax.ShapeDtypeStruct((M, N), jnp.float32),
        grid=(M // tm, N // tn, K // tk),
        in_specs=[pl.BlockSpec((tm, tk), lambda i, j, k: (i, k)),
                  pl.BlockSpec((tk, tn), lambda i, j, k: (k, j))],
        out_specs=pl.BlockSpec((tm, tn), lambda i, j, k: (i, j)),
        scratch_shapes=[pltpu.VMEM((tm, tn), jnp.float32)],
        compiler_params=pltpu.CompilerParams(
            dimension_semantics=("parallel", "parallel", "arbitrary")),
    )(x, w_t)


# ----------------------- in-kernel exact relative shift ---------------------

def _left_roll_lanes(x, amt):
    """out[:, j] = x[:, (j + amt) % R], static amt (lane slice + concat)."""
    R = x.shape[-1]
    amt = amt % R
    if amt == 0:
        return x
    return jnp.concatenate([x[:, amt:], x[:, :amt]], axis=1)


def _rel_shift_tile(bd):
    """Exact Transformer-XL ``_rel_shift`` on a (qlen, rlen) score tile.

    Row i is rolled left by (qlen-1-i); positions past the valid window get the
    zero / next-row wrap values of the PyTorch concat+view trick exactly.
    Implemented as a log2(qlen)-stage barrel shifter (static lane slices,
    concats and selects only -> VPU work that hides under the MXU), so BD never
    round-trips through HBM.
    """
    Q, R = bd.shape
    row = lax.broadcasted_iota(jnp.int32, (Q, R), 0)
    col = lax.broadcasted_iota(jnp.int32, (Q, R), 1)
    shift = (Q - 1) - row                       # per-row left-roll amount
    rolled = bd
    for b in range(max(1, (Q - 1).bit_length())):
        amt = 1 << b
        cand = _left_roll_lanes(rolled, amt)
        rolled = jnp.where((shift & amt) != 0, cand, rolled)
    # rolled[i, j] == bd[i, (j + Q - 1 - i) % R]
    if Q > 1:
        rolled_up = jnp.concatenate([rolled[1:, :], rolled[:1, :]], axis=0)
    else:
        rolled_up = rolled
    boundary = (R - Q) + row
    return jnp.where(col <= boundary, rolled,
                     jnp.where(col == boundary + 1, jnp.zeros_like(bd),
                               rolled_up))


# ------------------------- fused attention kernel ---------------------------

def _fused_attn_kernel(wh_ref, rk_ref, rwb_ref, rrb_ref, mask_ref, wres_ref,
                       ow_ref, lng_ref, lnb_ref, out_ref, *,
                       n_head, d_head, qlen, klen, scale, eps):
    ndh = n_head * d_head
    dn = (((1,), (1,)), ((), ()))               # contract over d_head
    mask_add = mask_ref[0]                      # (qlen, klen) additive mask
    proj = None
    for n in range(n_head):                     # static, unrolled head loop
        c0 = n * d_head
        q = wh_ref[0, klen - qlen:klen, c0:c0 + d_head]           # (Q, Dh)
        k = wh_ref[0, :, ndh + c0:ndh + c0 + d_head]              # (K, Dh)
        v = wh_ref[0, :, 2 * ndh + c0:2 * ndh + c0 + d_head]      # (K, Dh)
        rk = rk_ref[0, :, c0:c0 + d_head]                         # (R, Dh)
        rwb = rwb_ref[n:n + 1, :]                                 # (1, Dh)
        rrb = rrb_ref[n:n + 1, :]
        # scale folded into q (touches Q*Dh elements instead of Q*K)
        ac = lax.dot_general((q + rwb) * scale, k, dn,
                             preferred_element_type=jnp.float32)  # (Q, K)
        bd = lax.dot_general((q + rrb) * scale, rk, dn,
                             preferred_element_type=jnp.float32)  # (Q, R)
        s = ac + _rel_shift_tile(bd) + mask_add
        m = jnp.max(s, axis=-1, keepdims=True)
        p = jnp.exp(s - m)
        l = jnp.sum(p, axis=-1, keepdims=True)
        pv = jnp.dot(p, v, preferred_element_type=jnp.float32)    # (Q, Dh)
        head_out = pv * (1.0 / l)
        # o_net applied per head slice -> accumulate the (Q, d_model) output,
        # attn_vec is never materialized.
        contrib = jnp.dot(head_out, ow_ref[c0:c0 + d_head, :],
                          preferred_element_type=jnp.float32)
        proj = contrib if proj is None else proj + contrib
    y = wres_ref[0] + proj                                        # residual
    mu = jnp.mean(y, axis=-1, keepdims=True)
    var = jnp.mean(jnp.square(y - mu), axis=-1, keepdims=True)
    out_ref[0] = ((y - mu) * lax.rsqrt(var + eps) * lng_ref[...]
                  + lnb_ref[...])


# ------------------------------- forward pass -------------------------------

def rel_partial_mha_forward(w, r, r_w_bias, r_r_bias, params,
                            attn_mask=None, mems=None, pre_lnorm=False,
                            eps=1e-5):
    if pre_lnorm:
        # TODO(synk): pre_lnorm=True branch (LayerNorm before qkv_net) not implemented.
        raise NotImplementedError("pre_lnorm=True is not implemented")

    qlen, bsz, d_model = w.shape
    rlen = r.shape[0]
    n_head, d_head = r_w_bias.shape
    ndh = n_head * d_head
    scale = 1.0 / (d_head ** 0.5)

    cat = w if mems is None else jnp.concatenate([mems, w], axis=0)
    klen = cat.shape[0]
    assert rlen == klen, "AC + rel_shift(BD) requires rlen == klen"

    # single cheap layout change to batch-major; everything downstream uses
    # lane-dense [batch, seq, features] blocks (no per-head XLA transposes).
    cat_b = jnp.transpose(cat, (1, 0, 2))             # (B, K, Dm)
    r_b = jnp.transpose(r, (1, 0, 2))                 # (B, R, Dm)
    w_res = cat_b[:, klen - qlen:, :]                 # (B, Q, Dm) == w

    # ---- projections: tiled MXU matmuls ----
    w_heads = _linear(cat_b.reshape(bsz * klen, d_model),
                      params["qkv_w"].T).reshape(bsz, klen, 3 * ndh)
    r_heads = _linear(r_b.reshape(bsz * rlen, d_model),
                      params["r_w"].T).reshape(bsz, rlen, ndh)

    # ---- additive attention mask (precomputed; -1e30 avoids inf-inf NaNs) ----
    if attn_mask is None:
        mask_add = jnp.zeros((1, qlen, klen), jnp.float32)
        mask_map = lambda b: (0, 0, 0)
    elif attn_mask.ndim == 2:
        mask_add = jnp.where(attn_mask != 0, -1e30, 0.0).astype(jnp.float32)[None]
        mask_map = lambda b: (0, 0, 0)
    elif attn_mask.ndim == 3:                          # (qlen, klen, bsz)
        mask_add = jnp.where(jnp.transpose(attn_mask, (2, 0, 1)) != 0,
                             -1e30, 0.0).astype(jnp.float32)
        mask_map = lambda b: (b, 0, 0)
    else:
        raise ValueError("attn_mask must be 2-D or 3-D")

    kernel = functools.partial(_fused_attn_kernel, n_head=n_head,
                               d_head=d_head, qlen=qlen, klen=klen,
                               scale=scale, eps=eps)
    out_b = pl.pallas_call(
        kernel,
        out_shape=jax.ShapeDtypeStruct((bsz, qlen, d_model), jnp.float32),
        grid=(bsz,),
        in_specs=[
            pl.BlockSpec((1, klen, 3 * ndh), lambda b: (b, 0, 0)),   # qkv heads
            pl.BlockSpec((1, rlen, ndh), lambda b: (b, 0, 0)),       # r heads
            pl.BlockSpec((n_head, d_head), lambda b: (0, 0)),        # r_w_bias
            pl.BlockSpec((n_head, d_head), lambda b: (0, 0)),        # r_r_bias
            pl.BlockSpec((1, qlen, klen), mask_map),                 # additive mask
            pl.BlockSpec((1, qlen, d_model), lambda b: (b, 0, 0)),   # residual w
            pl.BlockSpec((ndh, d_model), lambda b: (0, 0)),          # o_w^T
            pl.BlockSpec((1, d_model), lambda b: (0, 0)),            # ln gamma
            pl.BlockSpec((1, d_model), lambda b: (0, 0)),            # ln beta
        ],
        out_specs=pl.BlockSpec((1, qlen, d_model), lambda b: (b, 0, 0)),
        compiler_params=pltpu.CompilerParams(
            dimension_semantics=("parallel",)),
    )(w_heads, r_heads, r_w_bias, r_r_bias, mask_add, w_res,
      params["o_w"].T, params["ln_g"].reshape(1, d_model),
      params["ln_b"].reshape(1, d_model))

    return jnp.transpose(out_b, (1, 0, 2))            # back to (Q, B, Dm)


# ----------------------- plain-JAX reference (checking) ---------------------

def _rel_shift_ref(x):
    Q, R, B, N = x.shape
    zp = jnp.zeros((Q, 1, B, N), x.dtype)
    xp = jnp.concatenate([zp, x], axis=1).reshape(R + 1, Q, B, N)
    return xp[1:].reshape(Q, R, B, N)


def reference_forward(w, r, r_w_bias, r_r_bias, params, attn_mask=None,
                      mems=None, eps=1e-5):
    qlen, bsz, d_model = w.shape
    rlen = r.shape[0]
    n_head, d_head = r_w_bias.shape
    scale = 1.0 / (d_head ** 0.5)
    cat = w if mems is None else jnp.concatenate([mems, w], axis=0)
    klen = cat.shape[0]
    w_heads = (cat @ params["qkv_w"].T).reshape(klen, bsz, 3, n_head, d_head)
    r_head_k = (r @ params["r_w"].T).reshape(rlen, bsz, n_head, d_head)
    q = w_heads[:, :, 0][-qlen:]
    k = w_heads[:, :, 1]
    v = w_heads[:, :, 2]
    AC = jnp.einsum("ibnd,jbnd->ijbn", q + r_w_bias, k)
    BD = _rel_shift_ref(jnp.einsum("ibnd,jbnd->ijbn", q + r_r_bias, r_head_k))
    score = (AC + BD) * scale
    if attn_mask is not None:
        if attn_mask.ndim == 2:
            score = jnp.where(attn_mask[:, :, None, None] != 0, -jnp.inf, score)
        else:
            score = jnp.where(attn_mask[:, :, :, None] != 0, -jnp.inf, score)
    prob = jax.nn.softmax(score, axis=1)
    av = jnp.einsum("ijbn,jbnd->ibnd", prob, v).reshape(qlen, bsz,
                                                        n_head * d_head)
    out = w + av @ params["o_w"].T
    mu = out.mean(-1, keepdims=True)
    var = ((out - mu) ** 2).mean(-1, keepdims=True)
    return (out - mu) / jnp.sqrt(var + eps) * params["ln_g"] + params["ln_b"]


# ----------------------------------- demo -----------------------------------

if __name__ == "__main__":
    n_head, d_head = 4, 8
    d_model = n_head * d_head                  # 32
    qlen, bsz = 8, 2

    key = jax.random.PRNGKey(0)
    ks = jax.random.split(key, 9)
    w = jax.random.normal(ks[0], (qlen, bsz, d_model), jnp.float32)
    r_w_bias = 0.02 * jax.random.normal(ks[1], (n_head, d_head), jnp.float32)
    r_r_bias = 0.02 * jax.random.normal(ks[2], (n_head, d_head), jnp.float32)
    params = dict(
        qkv_w=0.05 * jax.random.normal(ks[3], (3 * n_head * d_head, d_model),
                                       jnp.float32),
        r_w=0.05 * jax.random.normal(ks[4], (n_head * d_head, d_model),
                                     jnp.float32),
        o_w=0.05 * jax.random.normal(ks[5], (d_model, n_head * d_head),
                                     jnp.float32),
        ln_g=jnp.ones((d_model,), jnp.float32),
        ln_b=jnp.zeros((d_model,), jnp.float32),
    )

    def check(out, ref, name):
        assert out.shape == ref.shape, (name, out.shape, ref.shape)
        assert jnp.allclose(out, ref, atol=5e-4, rtol=5e-4), (
            f"{name}: max abs err {jnp.max(jnp.abs(out - ref))}")

    # case 1: mems=None, 2-D causal mask (standard decoder usage)
    r1 = jax.random.normal(ks[6], (qlen, bsz, d_model), jnp.float32)
    mask1 = (jnp.arange(qlen)[None, :] > jnp.arange(qlen)[:, None]).astype(jnp.uint8)
    out1 = jax.block_until_ready(
        rel_partial_mha_forward(w, r1, r_w_bias, r_r_bias, params,
                                attn_mask=mask1))
    check(out1, reference_forward(w, r1, r_w_bias, r_r_bias, params,
                                  attn_mask=mask1), "causal")

    # case 2: no mask (exercises the exact rel-shift including wrap values)
    out2 = jax.block_until_ready(
        rel_partial_mha_forward(w, r1, r_w_bias, r_r_bias, params,
                                attn_mask=None))
    check(out2, reference_forward(w, r1, r_w_bias, r_r_bias, params,
                                  attn_mask=None), "nomask")

    # case 3: with memory (mems), causal mask over klen = mlen + qlen
    mlen = 8
    klen = mlen + qlen
    mems = jax.random.normal(ks[7], (mlen, bsz, d_model), jnp.float32)
    r2 = jax.random.normal(ks[8], (klen, bsz, d_model), jnp.float32)
    mask2 = (jnp.arange(klen)[None, :] >
             (jnp.arange(qlen)[:, None] + mlen)).astype(jnp.uint8)
    out3 = jax.block_until_ready(
        rel_partial_mha_forward(w, r2, r_w_bias, r_r_bias, params,
                                attn_mask=mask2, mems=mems))
    check(out3, reference_forward(w, r2, r_w_bias, r_r_bias, params,
                                  attn_mask=mask2, mems=mems), "mems")

    print("KERNEL_OK")
</pallas_src>

<mosaic_0001>
module attributes {stable_mosaic.version = 11 : i64} {
  func.func @_matmul_kernel(%arg0: i32, %arg1: i32, %arg2: i32, %arg3: memref<16x32xf32, #tpu.memory_space<vmem>>, %arg4: memref<32x96xf32, #tpu.memory_space<vmem>>, %arg5: memref<16x96xf32, #tpu.memory_space<vmem>>, %arg6: memref<16x96xf32, #tpu.memory_space<vmem>>) attributes {dimension_semantics = [#tpu.dimension_semantics<parallel>, #tpu.dimension_semantics<parallel>, #tpu.dimension_semantics<arbitrary>], iteration_bounds = array<i64: 1, 1, 1>, scalar_prefetch = 0 : i64, scratch_operands = 1 : i64, tpu.core_type = #tpu.core_type<tc>, window_params = [{transform_indices = @transform_0, window_bounds = array<i64: 16, 32>}, {transform_indices = @transform_1, window_bounds = array<i64: 32, 96>}, {transform_indices = @transform_2, window_bounds = array<i64: 16, 96>}]} {
    %c0_i32 = arith.constant 0 : i32
    %0 = arith.cmpi eq, %arg2, %c0_i32 : i32
    %1 = arith.extui %0 : i1 to i32
    %c0_i32_0 = arith.constant 0 : i32
    %2 = arith.cmpi ne, %1, %c0_i32_0 : i32
    scf.if %2 {
      %cst_10 = arith.constant 0.000000e+00 : f32
      %12 = vector.broadcast %cst_10 : f32 to vector<16x96xf32>
      %c0_11 = arith.constant 0 : index
      %c0_12 = arith.constant 0 : index
      %13 = vector.load %arg6[%c0_11, %c0_12] : memref<16x96xf32, #tpu.memory_space<vmem>>, vector<16x96xf32>
      tpu.vector_store %arg6[%c0_11, %c0_12], %12 {strides = array<i32>} : memref<16x96xf32, #tpu.memory_space<vmem>>, vector<16x96xf32>,
    } else {
    }
    %c0 = arith.constant 0 : index
    %c0_1 = arith.constant 0 : index
    %3 = vector.load %arg6[%c0, %c0_1] : memref<16x96xf32, #tpu.memory_space<vmem>>, vector<16x96xf32>
    %c0_2 = arith.constant 0 : index
    %c0_3 = arith.constant 0 : index
    %4 = vector.load %arg3[%c0_2, %c0_3] : memref<16x32xf32, #tpu.memory_space<vmem>>, vector<16x32xf32>
    %c0_4 = arith.constant 0 : index
    %c0_5 = arith.constant 0 : index
    %5 = vector.load %arg4[%c0_4, %c0_5] : memref<32x96xf32, #tpu.memory_space<vmem>>, vector<32x96xf32>
    %cst = arith.constant dense<0.000000e+00> : vector<16x96xf32>
    %6 = tpu.matmul %4, %5, %cst {dimension_numbers = #tpu.dot_dimension_numbers<[1], [0], [0], [1], [0, 0, 1, 1], [], []>} : vector<16x32xf32>, vector<32x96xf32>, vector<16x96xf32> -> vector<16x96xf32>
    %7 = arith.addf %3, %6 : vector<16x96xf32>
    %c0_6 = arith.constant 0 : index
    %c0_7 = arith.constant 0 : index
    %8 = vector.load %arg6[%c0_6, %c0_7] : memref<16x96xf32, #tpu.memory_space<vmem>>, vector<16x96xf32>
    tpu.vector_store %arg6[%c0_6, %c0_7], %7 {strides = array<i32>} : memref<16x96xf32, #tpu.memory_space<vmem>>, vector<16x96xf32>,
    %c0_i32_8 = arith.constant 0 : i32
    %9 = arith.cmpi eq, %arg2, %c0_i32_8 : i32
    %10 = arith.extui %9 : i1 to i32
    %c0_i32_9 = arith.constant 0 : i32
    %11 = arith.cmpi ne, %10, %c0_i32_9 : i32
    scf.if %11 {
      %c0_10 = arith.constant 0 : index
      %c0_11 = arith.constant 0 : index
      %12 = vector.load %arg6[%c0_10, %c0_11] : memref<16x96xf32, #tpu.memory_space<vmem>>, vector<16x96xf32>
      %c0_12 = arith.constant 0 : index
      %c0_13 = arith.constant 0 : index
      %13 = vector.load %arg5[%c0_12, %c0_13] : memref<16x96xf32, #tpu.memory_space<vmem>>, vector<16x96xf32>
      tpu.vector_store %arg5[%c0_12, %c0_13], %12 {strides = array<i32>} : memref<16x96xf32, #tpu.memory_space<vmem>>, vector<16x96xf32>,
    } else {
    }
    return
  }
  func.func @transform_0(%arg0: i32, %arg1: i32, %arg2: i32) -> (i32, i32) {
    %c0_i32 = arith.constant 0 : i32
    return %arg0, %arg2 : i32, i32
  }
  func.func @transform_1(%arg0: i32, %arg1: i32, %arg2: i32) -> (i32, i32) {
    %c0_i32 = arith.constant 0 : i32
    return %arg2, %arg1 : i32, i32
  }
  func.func @transform_2(%arg0: i32, %arg1: i32, %arg2: i32) -> (i32, i32) {
    %c0_i32 = arith.constant 0 : i32
    return %arg0, %arg1 : i32, i32
  }
}

</mosaic_0001>

<llo_original>
// kernel: tpu_custom_call.1
$region0: #{tpu_custom_call.1}
  #allocation0 [shape = 'u32[]', space=smem, size = 0x4, offset = 0x4, fixed_abs, tag = 'smem constant byte address 0x4 - core index']
  #allocation1 [shape = 'u32[144,128]{1,0:T(1,128)}', space=vmem, size = 0x12000, scoped, tag = 'internal scratch']
  #allocation2 [shape = 'f32[16,96]{1,0:T(8,128)}', space=vmem, size = 0x2000, scoped, tag = 'scratch operand']
  %s0 = inlined_call_operand.hbm [shape: f32[16,32], index: 0, kind: input, shape index: {}]
  %s1 = inlined_call_operand.hbm [shape: f32[32,96], index: 1, kind: input, shape index: {}]
  %s2 = inlined_call_operand.hbm [shape: f32[16,96], index: 2, kind: output, shape index: {}]
  %s3 = sld [smem:[#allocation0]]
  $region34: #{tpu_custom_call.1} parent=0
    _
  %s5 = ssub.s32 1, %s3
  %s6 = scalar_select 0, %s5, %s3
  $region1: #{tpu_custom_call.1} parent=0
    #allocation3 [shape = 'u8[8192]{0}', space=vmem, size = 0x2000, scoped, tag = 'input window, operand 0, single buffered']
    #allocation4 [shape = 's32[1]{0}', space=sflag, size = 0x4, scoped, tag = 'scoped memory for tpu_custom_call.1']
    #allocation5 [shape = 's32[1]{0}', space=sflag, size = 0x4, scoped, tag = 'scoped memory for tpu_custom_call.1']
    #allocation6 [shape = 'u8[16384]{0}', space=vmem, size = 0x4000, scoped, tag = 'input window, operand 1, single buffered']
    #allocation7 [shape = 's32[1]{0}', space=sflag, size = 0x4, scoped, tag = 'scoped memory for tpu_custom_call.1']
    #allocation8 [shape = 'u8[8192]{0}', space=vmem, size = 0x2000, scoped, tag = 'output window, operand 0, single buffered']
    %7 = vsyncpa [#allocation4], 0
    %8 = vsyncpa [#allocation7], 0
    %9 = vsyncpa [#allocation5], 0
    // Predicated region
    $region2: #{tpu_custom_call.1} parent=1 // pred_check
      _
    $region3: #{tpu_custom_call.1} parent=1 // pred_check_branch
      %11 = sbr.rel (0) target = $region5
    $region4: #{tpu_custom_call.1} parent=1 // pred_region
      %s13 = ssub.s32 256, 256
      %14 = vsyncadd [#allocation4], %s13
      %s15 = sshll.u32 [#allocation3], 4
      %s16 = int_to_ptr.vmem [resolvable:$true] %s15
      %21 = dma.hbm_to_vmem [thread:$0]  %s0, 256, %s16, [#allocation4], 128, 128, 8
    $region5: #{tpu_custom_call.1} parent=1 // pred_fallthru
      _
    // Predicated region
    $region6: #{tpu_custom_call.1} parent=1 // pred_check
      _
    $region7: #{tpu_custom_call.1} parent=1 // pred_check_branch
      %23 = sbr.rel (0) target = $region9
    $region8: #{tpu_custom_call.1} parent=1 // pred_region
      %s25 = ssub.s32 512, 512
      %26 = vsyncadd [#allocation7], %s25
      %s27 = sshll.u32 [#allocation6], 4
      %s28 = int_to_ptr.vmem [resolvable:$true] %s27
      %33 = dma.hbm_to_vmem [thread:$0]  %s1, 512, %s28, [#allocation7], 128, 128, 8
    $region9: #{tpu_custom_call.1} parent=1 // pred_fallthru
      _
    // Predicated region
    $region10: #{tpu_custom_call.1} parent=1 // pred_check
      _
    $region11: #{tpu_custom_call.1} parent=1 // pred_check_branch
      %35 = sbr.rel (0) target = $region13
    $region12: #{tpu_custom_call.1} parent=1 // pred_region
      %36 = dma.done [#allocation4], 256
    $region13: #{tpu_custom_call.1} parent=1 // pred_fallthru
      _
    // Predicated region
    $region14: #{tpu_custom_call.1} parent=1 // pred_check
      _
    $region15: #{tpu_custom_call.1} parent=1 // pred_check_branch
      %38 = sbr.rel (0) target = $region17
    $region16: #{tpu_custom_call.1} parent=1 // pred_region
      %39 = dma.done [#allocation7], 512
    $region17: #{tpu_custom_call.1} parent=1 // pred_fallthru
      _
    %p40 = scmp.eq.s32.totalorder 0, 0
    // Predicated region
    $region18: #{tpu_custom_call.1} parent=1 // pred_check
      %p41 = pneg %p40
    $region19: #{tpu_custom_call.1} parent=1 // pred_check_branch
      %43 = sbr.rel (%p41) target = $region21
    $region20: #{tpu_custom_call.1} parent=1 // pred_region
      %vm44 = vcmask 785408
      %45 = vst.msk [vmem:[#allocation2] sm:$0xff] %vm44, 0.0
      %46 = vst.msk [vmem:[#allocation2 + $0x8] sm:$0xff] %vm44, 0.0
    $region21: #{tpu_custom_call.1} parent=1 // pred_fallthru
      _
    %v47 = vld [vmem:[#allocation2] sm:$0xff]
    %v48 = vld [vmem:[#allocation2 + $0x8] sm:$0xff]
    %v49 = vld [vmem:[#allocation3] sm:$0xff]
    %v50 = vld [vmem:[#allocation3 + $0x8] sm:$0xff]
    %v51 = vld [vmem:[#allocation6] sm:$0xff]
    %v52 = vld [vmem:[#allocation6 + $0x8] sm:$0xff]
    %v53 = vld [vmem:[#allocation6 + $0x10] sm:$0xff]
    %v54 = vld [vmem:[#allocation6 + $0x18] sm:$0xff]
    %vm55 = vcmask 261120
    %v57 = vsel %vm55, %v49, 0
    %v60 = vsel %vm55, %v50, 0
    %62 = vmatprep.subr.mxu0 0.0
    %63 = vmatpush1.msra.mxu0 %v51
    %64 = vmatprep.subr.mxu0 0.0
    %65 = vmatpush1.msra.mxu0 %v52
    %66 = vmatprep.subr.mxu0 0.0
    %67 = vmatpush1.msra.mxu0 %v53
    %68 = vmatprep.subr.mxu0 0.0
    %69 = vmatpush1.msra.mxu0 %v54
    %70 = vmatprep.subr.mxu0 0.0
    %71 = vmatpush1.msra.mxu0 0.0
    %72 = vmatprep.subr.mxu0 0.0
    %73 = vmatpush1.msra.mxu0 0.0
    %74 = vmatprep.subr.mxu0 0.0
    %75 = vmatpush1.msra.mxu0 0.0
    %76 = vmatprep.subr.mxu0 0.0
    %77 = vmatpush1.msra.mxu0 0.0
    %78 = vmatprep.subr.mxu0 0.0
    %79 = vmatpush1.msra.mxu0 0.0
    %80 = vmatprep.subr.mxu0 0.0
    %81 = vmatpush1.msra.mxu0 0.0
    %82 = vmatprep.subr.mxu0 0.0
    %83 = vmatpush1.msra.mxu0 0.0
    %84 = vmatprep.subr.mxu0 0.0
    %85 = vmatpush1.msra.mxu0 0.0
    %86 = vmatprep.subr.mxu0 0.0
    %87 = vmatpush1.msra.mxu0 0.0
    %88 = vmatprep.subr.mxu0 0.0
    %89 = vmatpush1.msra.mxu0 0.0
    %90 = vmatprep.subr.mxu0 0.0
    %91 = vmatpush1.msra.mxu0 0.0
    %92 = vmatprep.subr.mxu0 0.0
    %93 = vmatpush1.msra.mxu0 0.0
    %94 = vmatprep.subr.mxu0 0.0
    %95 = vmatpush1.msra.mxu0 0.0
    %96 = vmatprep.subr.mxu0 0.0
    %97 = vmatpush1.msra.mxu0 0.0
    %98 = vmatprep.subr.mxu0 0.0
    %99 = vmatpush1.msra.mxu0 0.0
    %100 = vmatprep.subr.mxu0 0.0
    %101 = vmatpush1.msra.mxu0 0.0
    %102 = vmatprep.subr.mxu0 0.0
    %103 = vmatpush1.msra.mxu0 0.0
    %104 = vmatprep.subr.mxu0 0.0
    %105 = vmatpush1.msra.mxu0 0.0
    %106 = vmatprep.subr.mxu0 0.0
    %107 = vmatpush1.msra.mxu0 0.0
    %108 = vmatprep.subr.mxu0 0.0
    %109 = vmatpush1.msra.mxu0 0.0
    %110 = vmatprep.subr.mxu0 0.0
    %111 = vmatpush1.msra.mxu0 0.0
    %112 = vmatprep.subr.mxu0 0.0
    %113 = vmatpush1.msra.mxu0 0.0
    %114 = vmatprep.subr.mxu0 0.0
    %115 = vmatpush1.msra.mxu0 0.0
    %116 = vmatprep.subr.mxu0 0.0
    %117 = vmatpush1.msra.mxu0 0.0
    %118 = vmatprep.subr.mxu0 0.0
    %119 = vmatpush1.msra.mxu0 0.0
    %120 = vmatprep.subr.mxu0 0.0
    %121 = vmatpush1.msra.mxu0 0.0
    %122 = vmatprep.subr.mxu0 0.0
    %123 = vmatpush1.msra.mxu0 0.0
    %124 = vmatprep.subr.mxu0 0.0
    %125 = vmatpush1.msra.mxu0 0.0
    %126 = vmatprep.mubr.f32.mxu0 0.0
    %127 = vmatmul.mubr.f32.gmra.mrb[0].mxu0 %v57
    %v128 = vpop.f32.mrb[0].mxu0
    %v129 = vadd.f32 0.0, %v128
    %v130 = vpop.f32.mrb[0].mxu0
    %131 = vmatprep.mubr.f32.mxu0 0.0
    %132 = vmatmul.mubr.f32.gmra.mrb[0].mxu0 %v60
    %v133 = vpop.f32.mrb[0].mxu0
    %v134 = vadd.f32 0.0, %v133
    %v135 = vpop.f32.mrb[0].mxu0
    %136 = vdwg.mxu0
    %v137 = vadd.f32 %v47, %v129
    %v138 = vadd.f32 %v48, %v134
    %vm139 = vcmask 785408
    %140 = vst.msk [vmem:[#allocation2] sm:$0xff] %vm139, %v137
    %141 = vst.msk [vmem:[#allocation2 + $0x8] sm:$0xff] %vm139, %v138
    // Predicated region
    $region22: #{tpu_custom_call.1} parent=1 // pred_check
      %p142 = pneg %p40
    $region23: #{tpu_custom_call.1} parent=1 // pred_check_branch
      %144 = sbr.rel (%p142) target = $region25
    $region24: #{tpu_custom_call.1} parent=1 // pred_region
      %v145 = vld [vmem:[#allocation2] sm:$0xff]
      %v146 = vld [vmem:[#allocation2 + $0x8] sm:$0xff]
      %147 = vst.msk [vmem:[#allocation8] sm:$0xff] %vm139, %v145
      %148 = vst.msk [vmem:[#allocation8 + $0x8] sm:$0xff] %vm139, %v146
    $region25: #{tpu_custom_call.1} parent=1 // pred_fallthru
      _
    // Predicated region
    $region26: #{tpu_custom_call.1} parent=1 // pred_check
      _
    $region27: #{tpu_custom_call.1} parent=1 // pred_check_branch
      %150 = sbr.rel (0) target = $region29
    $region28: #{tpu_custom_call.1} parent=1 // pred_region
      %s152 = ssub.s32 256, 256
      %153 = vsyncadd [#allocation5], %s152
      %s154 = sshll.u32 [#allocation8], 4
      %s155 = int_to_ptr.vmem [resolvable:$true] %s154
      %160 = dma.vmem_to_hbm [thread:$0]  %s155, 256, %s2, [#allocation5], 128, 128, 8
    $region29: #{tpu_custom_call.1} parent=1 // pred_fallthru
      _
    // Predicated region
    $region30: #{tpu_custom_call.1} parent=1 // pred_check
      _
    $region31: #{tpu_custom_call.1} parent=1 // pred_check_branch
      %162 = sbr.rel (0) target = $region33
    $region32: #{tpu_custom_call.1} parent=1 // pred_region
      %163 = dma.done [#allocation5], 256
    $region33: #{tpu_custom_call.1} parent=1 // pred_fallthru
      _
    %164 = vsyncpa [#allocation4], 1
    %165 = vsyncpa [#allocation7], 1
    %166 = vsyncpa [#allocation5], 1

</llo_original>
